<compile_context>
chip_gen: v7x
topology: tpu7x:2x2x1
jax: 0.10.0
libtpu: 0.0.40
codegen_flags: <defaults>
</compile_context>

<pallas_src>
import jax
import jax.numpy as jnp
from jax.experimental import pallas as pl
from jax.experimental.pallas import tpu as pltpu


def _round_up(n, m):
    return ((n + m - 1) // m) * m


def value_net_kernel(x_ref, w1_ref, b1_ref, w2_ref, b2_ref, w3_ref, b3_ref,
                     o_ref):
    # fc1 + ReLU: bf16 operands on the MXU, f32 accumulate, f32 epilogue.
    x = x_ref[...].astype(jnp.bfloat16)          # no-op if x already bf16
    h1 = jnp.dot(x, w1_ref[...], preferred_element_type=jnp.float32)
    h1 = jnp.maximum(h1 + b1_ref[...], 0.0)

    # fc2 + ReLU: same recipe.
    h2 = jnp.dot(h1.astype(jnp.bfloat16), w2_ref[...],
                 preferred_element_type=jnp.float32)
    h2 = jnp.maximum(h2 + b2_ref[...], 0.0)

    # fc3 off the MXU: broadcast-multiply by the (1, 40) weight row (VPU) and
    # cross-lane sum (XLU) -> (TB, 1). Scalar bias comes from SMEM.
    out = jnp.sum(h2 * w3_ref[...], axis=-1, keepdims=True) + b3_ref[0]

    o_ref[...] = out.astype(o_ref.dtype)


def value_net_forward(x, params, *, block_batch=8192):
    """x: (B, state_dim) -> (B, 1) float32."""
    w1, b1, w2, b2, w3, b3 = params
    B, state_dim = x.shape
    hidden = w1.shape[1]

    # Batch tile: multiple of 8 sublanes; aim for >=2 blocks so both v7x
    # TensorCores get work (no-op on single-TC v5e/v6e).
    tb = max(8, min(block_batch, _round_up(-(-B // 2), 8)))
    tb = _round_up(tb, 8)
    num_blocks = pl.cdiv(B, tb)

    # Cast matmul weights to bf16 once (tiny, weight-resident); biases and the
    # VPU-side fc3 weight stay f32.
    w1b = w1.astype(jnp.bfloat16)
    w2b = w2.astype(jnp.bfloat16)

    flops = 2 * B * (state_dim * hidden + hidden * hidden + hidden)
    bytes_accessed = (x.size * x.dtype.itemsize + B * 4
                      + (w1b.size + w2b.size) * 2
                      + (b1.size + b2.size + w3.size + b3.size) * 4)

    out = pl.pallas_call(
        value_net_kernel,
        out_shape=jax.ShapeDtypeStruct((B, 1), jnp.float32),
        grid=(num_blocks,),
        in_specs=[
            # Only x is re-tiled per grid step (double-buffered by Pallas);
            # partial last block is pad-read, tail rows never written back.
            pl.BlockSpec((tb, state_dim), lambda i: (i, 0)),
            # Weights / biases: constant block index -> fetched once, resident.
            pl.BlockSpec(w1b.shape, lambda i: (0, 0)),
            pl.BlockSpec(b1.shape, lambda i: (0, 0)),
            pl.BlockSpec(w2b.shape, lambda i: (0, 0)),
            pl.BlockSpec(b2.shape, lambda i: (0, 0)),
            pl.BlockSpec(w3.shape, lambda i: (0, 0)),
            # fc3 bias: single scalar in SMEM.
            pl.BlockSpec(memory_space=pltpu.MemorySpace.SMEM),
        ],
        out_specs=pl.BlockSpec((tb, 1), lambda i: (i, 0)),
        compiler_params=pltpu.CompilerParams(
            dimension_semantics=("parallel",),
            vmem_limit_bytes=48 << 20),
        cost_estimate=pl.CostEstimate(flops=flops, transcendentals=0,
                                      bytes_accessed=bytes_accessed),
    )(x, w1b, b1, w2b, b2, w3, b3)
    return out


def init_params(key, state_dim, hidden=40):
    """Mimics nn.Linear's uniform(-1/sqrt(fan_in), 1/sqrt(fan_in)) init.
    fc1/fc2 weights stored pre-transposed as (in, out); fc3 weight kept in
    PyTorch (out=1, in=hidden) layout; fc3 bias is a 1-element vector."""
    ks = jax.random.split(key, 6)

    def uniform(k, shape, fan_in):
        bound = 1.0 / jnp.sqrt(jnp.float32(fan_in))
        return jax.random.uniform(k, shape, jnp.float32,
                                  minval=-bound, maxval=bound)

    w1 = uniform(ks[0], (state_dim, hidden), state_dim)   # (in, out)
    b1 = uniform(ks[1], (1, hidden), state_dim)
    w2 = uniform(ks[2], (hidden, hidden), hidden)          # (in, out)
    b2 = uniform(ks[3], (1, hidden), hidden)
    w3 = uniform(ks[4], (1, hidden), hidden)                # (out=1, in)
    b3 = uniform(ks[5], (1,), hidden)
    return (w1, b1, w2, b2, w3, b3)


def reference_forward(x, params):
    w1, b1, w2, b2, w3, b3 = params
    h1 = jnp.maximum(x @ w1 + b1, 0.0)
    h2 = jnp.maximum(h1 @ w2 + b2, 0.0)
    return h2 @ w3.T + b3


if __name__ == "__main__":
    key = jax.random.PRNGKey(0)
    k_params, k_x1, k_x2 = jax.random.split(key, 3)

    state_dim = 32
    params = init_params(k_params, state_dim)

    # bf16 matmul operands with f32 accumulation -> ~1e-2-level abs error vs
    # the pure-f32 reference; use correspondingly loose tolerances.
    ATOL = 5e-2
    RTOL = 5e-2

    # 1) Small batch (single grid step).
    x_small = jax.random.normal(k_x1, (16, state_dim), jnp.float32)
    out_small = jax.block_until_ready(value_net_forward(x_small, params))
    ref_small = reference_forward(x_small, params)
    assert out_small.shape == (16, 1), out_small.shape
    assert jnp.allclose(out_small, ref_small, atol=ATOL, rtol=RTOL), (
        f"max err {jnp.max(jnp.abs(out_small - ref_small))}")

    # 2) Larger, non-multiple batch: multi-block grid + partial last block
    #    (Pallas pad-read / masked write), resident weights across grid steps.
    x_big = jax.random.normal(k_x2, (300, state_dim), jnp.float32)
    out_big = jax.block_until_ready(
        value_net_forward(x_big, params, block_batch=128))
    ref_big = reference_forward(x_big, params)
    assert out_big.shape == (300, 1), out_big.shape
    assert jnp.allclose(out_big, ref_big, atol=ATOL, rtol=RTOL), (
        f"max err {jnp.max(jnp.abs(out_big - ref_big))}")

    # 3) x already bf16 upstream (no wrapper-side astype pass needed).
    out_bf16 = jax.block_until_ready(
        value_net_forward(x_big.astype(jnp.bfloat16), params, block_batch=128))
    assert jnp.allclose(out_bf16, ref_big, atol=ATOL, rtol=RTOL), (
        f"max err {jnp.max(jnp.abs(out_bf16 - ref_big))}")

    print("KERNEL_OK")
</pallas_src>

<mosaic_0001>
module attributes {stable_mosaic.version = 11 : i64} {
  func.func @value_net_kernel(%arg0: i32, %arg1: memref<8x32xf32, #tpu.memory_space<vmem>>, %arg2: memref<32x40xbf16, #tpu.memory_space<vmem>>, %arg3: memref<1x40xf32, #tpu.memory_space<vmem>>, %arg4: memref<40x40xbf16, #tpu.memory_space<vmem>>, %arg5: memref<1x40xf32, #tpu.memory_space<vmem>>, %arg6: memref<1x40xf32, #tpu.memory_space<vmem>>, %arg7: memref<1xf32, #tpu.memory_space<smem>>, %arg8: memref<8x1xf32, #tpu.memory_space<vmem>>) attributes {dimension_semantics = [#tpu.dimension_semantics<parallel>], iteration_bounds = array<i64: 2>, scalar_prefetch = 0 : i64, scratch_operands = 0 : i64, tpu.core_type = #tpu.core_type<tc>, window_params = [{transform_indices = @transform_0, window_bounds = array<i64: 8, 32>}, {pipeline_mode = #tpu.pipeline_mode<synchronous>, transform_indices = @transform_1, window_bounds = array<i64: 32, 40>}, {pipeline_mode = #tpu.pipeline_mode<synchronous>, transform_indices = @transform_2, window_bounds = array<i64: 1, 40>}, {pipeline_mode = #tpu.pipeline_mode<synchronous>, transform_indices = @transform_3, window_bounds = array<i64: 40, 40>}, {pipeline_mode = #tpu.pipeline_mode<synchronous>, transform_indices = @transform_4, window_bounds = array<i64: 1, 40>}, {pipeline_mode = #tpu.pipeline_mode<synchronous>, transform_indices = @transform_5, window_bounds = array<i64: 1, 40>}, {transform_indices = @transform_6, window_bounds = array<i64: 1>}, {transform_indices = @transform_7, window_bounds = array<i64: 8, 1>}]} {
    %c0 = arith.constant 0 : index
    %c0_0 = arith.constant 0 : index
    %0 = vector.load %arg1[%c0, %c0_0] : memref<8x32xf32, #tpu.memory_space<vmem>>, vector<8x32xf32>
    %1 = arith.truncf %0 : vector<8x32xf32> to vector<8x32xbf16>
    %c0_1 = arith.constant 0 : index
    %c0_2 = arith.constant 0 : index
    %2 = vector.load %arg2[%c0_1, %c0_2] : memref<32x40xbf16, #tpu.memory_space<vmem>>, vector<32x40xbf16>
    %cst = arith.constant dense<0.000000e+00> : vector<8x40xf32>
    %3 = tpu.matmul %1, %2, %cst {dimension_numbers = #tpu.dot_dimension_numbers<[1], [0], [0], [1], [0, 0, 1, 1], [], []>} : vector<8x32xbf16>, vector<32x40xbf16>, vector<8x40xf32> -> vector<8x40xf32>
    %c0_3 = arith.constant 0 : index
    %c0_4 = arith.constant 0 : index
    %4 = vector.load %arg3[%c0_3, %c0_4] : memref<1x40xf32, #tpu.memory_space<vmem>>, vector<1x40xf32>
    %5 = vector.broadcast %4 : vector<1x40xf32> to vector<8x40xf32>
    %6 = arith.addf %3, %5 : vector<8x40xf32>
    %cst_5 = arith.constant 0.000000e+00 : f32
    %7 = vector.broadcast %cst_5 : f32 to vector<8x40xf32>
    %8 = arith.maximumf %6, %7 : vector<8x40xf32>
    %9 = arith.truncf %8 : vector<8x40xf32> to vector<8x40xbf16>
    %c0_6 = arith.constant 0 : index
    %c0_7 = arith.constant 0 : index
    %10 = vector.load %arg4[%c0_6, %c0_7] : memref<40x40xbf16, #tpu.memory_space<vmem>>, vector<40x40xbf16>
    %cst_8 = arith.constant dense<0.000000e+00> : vector<8x40xf32>
    %11 = tpu.matmul %9, %10, %cst_8 {dimension_numbers = #tpu.dot_dimension_numbers<[1], [0], [0], [1], [0, 0, 1, 1], [], []>} : vector<8x40xbf16>, vector<40x40xbf16>, vector<8x40xf32> -> vector<8x40xf32>
    %c0_9 = arith.constant 0 : index
    %c0_10 = arith.constant 0 : index
    %12 = vector.load %arg5[%c0_9, %c0_10] : memref<1x40xf32, #tpu.memory_space<vmem>>, vector<1x40xf32>
    %13 = vector.broadcast %12 : vector<1x40xf32> to vector<8x40xf32>
    %14 = arith.addf %11, %13 : vector<8x40xf32>
    %cst_11 = arith.constant 0.000000e+00 : f32
    %15 = vector.broadcast %cst_11 : f32 to vector<8x40xf32>
    %16 = arith.maximumf %14, %15 : vector<8x40xf32>
    %c0_12 = arith.constant 0 : index
    %c0_13 = arith.constant 0 : index
    %17 = vector.load %arg6[%c0_12, %c0_13] : memref<1x40xf32, #tpu.memory_space<vmem>>, vector<1x40xf32>
    %18 = vector.broadcast %17 : vector<1x40xf32> to vector<8x40xf32>
    %19 = arith.mulf %16, %18 : vector<8x40xf32>
    %cst_14 = arith.constant dense<0.000000e+00> : vector<8xf32>
    %20 = vector.multi_reduction <add>, %19, %cst_14 [1] : vector<8x40xf32> to vector<8xf32>
    %21 = vector.shape_cast %20 : vector<8xf32> to vector<8x1xf32>
    %c0_15 = arith.constant 0 : index
    %22 = memref.load %arg7[%c0_15] : memref<1xf32, #tpu.memory_space<smem>>
    %23 = vector.broadcast %22 : f32 to vector<8x1xf32>
    %24 = arith.addf %21, %23 : vector<8x1xf32>
    %c0_16 = arith.constant 0 : index
    %c0_17 = arith.constant 0 : index
    %25 = vector.load %arg8[%c0_16, %c0_17] : memref<8x1xf32, #tpu.memory_space<vmem>>, vector<8x1xf32>
    tpu.vector_store %arg8[%c0_16, %c0_17], %24 {strides = array<i32>} : memref<8x1xf32, #tpu.memory_space<vmem>>, vector<8x1xf32>,
    return
  }
  func.func @transform_0(%arg0: i32) -> (i32, i32) {
    %c0_i32 = arith.constant 0 : i32
    %c0_i32_0 = arith.constant 0 : i32
    return %arg0, %c0_i32 : i32, i32
  }
  func.func @transform_1(%arg0: i32) -> (i32, i32) {
    %c0_i32 = arith.constant 0 : i32
    %c0_i32_0 = arith.constant 0 : i32
    %c0_i32_1 = arith.constant 0 : i32
    return %c0_i32, %c0_i32_0 : i32, i32
  }
  func.func @transform_2(%arg0: i32) -> (i32, i32) {
    %c0_i32 = arith.constant 0 : i32
    %c0_i32_0 = arith.constant 0 : i32
    %c0_i32_1 = arith.constant 0 : i32
    return %c0_i32, %c0_i32_0 : i32, i32
  }
  func.func @transform_3(%arg0: i32) -> (i32, i32) {
    %c0_i32 = arith.constant 0 : i32
    %c0_i32_0 = arith.constant 0 : i32
    %c0_i32_1 = arith.constant 0 : i32
    return %c0_i32, %c0_i32_0 : i32, i32
  }
  func.func @transform_4(%arg0: i32) -> (i32, i32) {
    %c0_i32 = arith.constant 0 : i32
    %c0_i32_0 = arith.constant 0 : i32
    %c0_i32_1 = arith.constant 0 : i32
    return %c0_i32, %c0_i32_0 : i32, i32
  }
  func.func @transform_5(%arg0: i32) -> (i32, i32) {
    %c0_i32 = arith.constant 0 : i32
    %c0_i32_0 = arith.constant 0 : i32
    %c0_i32_1 = arith.constant 0 : i32
    return %c0_i32, %c0_i32_0 : i32, i32
  }
  func.func @transform_6(%arg0: i32) -> i32 {
    %c0_i32 = arith.constant 0 : i32
    %c0_i32_0 = arith.constant 0 : i32
    return %c0_i32 : i32
  }
  func.func @transform_7(%arg0: i32) -> (i32, i32) {
    %c0_i32 = arith.constant 0 : i32
    %c0_i32_0 = arith.constant 0 : i32
    return %arg0, %c0_i32 : i32, i32
  }
}

</mosaic_0001>

<llo_original>
// kernel: tpu_custom_call.1
$region0: #{tpu_custom_call.1}
  #allocation0 [shape = 'u32[]', space=smem, size = 0x4, offset = 0x4, fixed_abs, tag = 'smem constant byte address 0x4 - core index']
  #allocation1 [shape = 'u32[144,128]{1,0:T(1,128)}', space=vmem, size = 0x12000, scoped, tag = 'internal scratch']
  #allocation2 [shape = 'f32[1]{0:T(128)S(6)}', space=smem, size = 0x200, scoped, tag = 'scoped memory for tpu_custom_call.1']
  %s0 = inlined_call_operand.hbm [shape: f32[16,32], index: 0, kind: input, shape index: {}]
  %s1 = inlined_call_operand.hbm [shape: bf16[32,40], index: 1, kind: input, shape index: {}]
  %s2 = inlined_call_operand.vmem [shape: f32[1,40], index: 2, kind: input, shape index: {}]
  %s3 = inlined_call_operand.hbm [shape: bf16[40,40], index: 3, kind: input, shape index: {}]
  %s4 = inlined_call_operand.vmem [shape: f32[1,40], index: 4, kind: input, shape index: {}]
  %s5 = inlined_call_operand.vmem [shape: f32[1,40], index: 5, kind: input, shape index: {}]
  %s6 = inlined_call_operand.<no memory space> [shape: f32[1], index: 6, kind: input, shape index: {}]
  %s7 = inlined_call_operand.vmem [shape: f32[16,1], index: 7, kind: output, shape index: {}]
  %s8 = sld [smem:[#allocation0]]
  $region73: #{tpu_custom_call.1} parent=0
    _
  %s10 = ssub.s32 1, %s8
  %s11 = scalar_select 0, %s10, %s8
  %12 = sst [smem:[#allocation2]] %s6
  $region1: #{tpu_custom_call.1} parent=0
    #allocation3 [shape = 'u8[8192]{0}', space=vmem, size = 0x2000, scoped, tag = 'input window, operand 0']
    #allocation4 [shape = 's32[2]{0}', space=sflag, size = 0x8, scoped, tag = 'scoped memory for tpu_custom_call.1']
    #allocation5 [shape = 'u8[8192]{0}', space=vmem, size = 0x2000, scoped, tag = 'input window, operand 1, single buffered']
    #allocation6 [shape = 's32[1]{0}', space=sflag, size = 0x4, scoped, tag = 'scoped memory for tpu_custom_call.1']
    #allocation7 [shape = 'u8[10240]{0}', space=vmem, size = 0x2800, scoped, tag = 'input window, operand 3, single buffered']
    %13 = vsyncpa [#allocation4], 0
    %s14 = scalar_lea.sflag [#allocation4], 1
    %15 = vsyncpa %s14, 0
    %16 = vsyncpa [#allocation6], 0
    loop: start=0, step=1, limit=4
    $region2: #{tpu_custom_call.1} parent=1 // loop_pre_header
      _
    $region3: #{tpu_custom_call.1} parent=1 // loop_header
      %s18 = sphi 0, %s22
      %p19 = scmp.ge.s32.totalorder %s18, 4
      %s28 = sphi 0, %s30
      %s31 = sphi 0, %s28
      %s32 = sphi 0, %s31
      %s48 = sphi 0, %s32
      %s52 = sphi 0, %s52
      %s54 = sphi 0, %s52
      %s55 = sphi 0, %s54
      %s69 = sphi 0, %s55
      %s73 = sphi 0, %s73
      %s75 = sphi 0, %s73
      %s76 = sphi 0, %s75
      %s90 = sphi 0, %s76
      %s94 = sphi 0, %s94
      %s96 = sphi 0, %s94
      %s97 = sphi 0, %s96
      %s111 = sphi 0, %s97
      %s115 = sphi 0, %s115
      %s117 = sphi 0, %s115
      %s118 = sphi 0, %s117
      %s132 = sphi 0, %s118
      %s136 = sphi 0, %s136
      %s138 = sphi 0, %s136
      %s139 = sphi 0, %s138
      %s153 = sphi 0, %s139
      %s157 = sphi 0, %s157
      %s159 = sphi 0, %s157
      %s160 = sphi 0, %s159
      %s174 = sphi 0, %s160
      %s180 = sphi 0, %s182
      %s183 = sphi 0, %s180
      %s184 = sphi 0, %s183
      %s200 = sphi 0, %s184
    $region4: #{tpu_custom_call.1} parent=1 // loop_header_branch
      %21 = sbr.rel (%p19) target = $region8
    $region5: #{tpu_custom_call.1} parent=1 // loop_body
      %s23 = ssub.s32 %s18, 1
      %s24 = ssub.s32 %s18, 2
      %s25 = sadd.s32 %s18, 1
      %s26 = ssub.s32 %s18, %s25
      %p27 = scmp.eq.s32.totalorder %s26, 0
      %s29 = sadd.s32 %s28, 1
      %s30 = scalar_select %p27, %s28, %s29
      %p33 = pneg %p27
      %p34 = scmp.eq.s32.totalorder %s18, 1
      %p35 = por %p33, %p34
      %p36 = scmp.ne.s32.totalorder %s28, %s31
      %p37 = scmp.eq.s32.totalorder %s18, 0
      %p38 = por %p36, %p37
      %p39 = scmp.ne.s32.totalorder %s28, %s31
      %p40 = scmp.eq.s32.totalorder %s23, 1
      %p41 = por %p39, %p40
      %p42 = scmp.ne.s32.totalorder %s31, %s32
      %p43 = scmp.eq.s32.totalorder %s23, 0
      %p44 = por %p42, %p43
      %p45 = scmp.ne.s32.totalorder %s31, %s32
      %p46 = scmp.eq.s32.totalorder %s24, 1
      %p47 = por %p45, %p46
      %p49 = scmp.ne.s32.totalorder %s32, %s48
      %p50 = scmp.eq.s32.totalorder %s24, 0
      %p51 = por %p49, %p50
      %s53 = sadd.s32 %s52, 1
      %p56 = scmp.eq.s32.totalorder %s18, 1
      %p57 = scmp.ne.s32.totalorder %s52, %s54
      %p58 = scmp.eq.s32.totalorder %s18, 0
      %p59 = por %p57, %p58
      %p60 = scmp.ne.s32.totalorder %s52, %s54
      %p61 = scmp.eq.s32.totalorder %s23, 1
      %p62 = por %p60, %p61
      %p63 = scmp.ne.s32.totalorder %s54, %s55
      %p64 = scmp.eq.s32.totalorder %s23, 0
      %p65 = por %p63, %p64
      %p66 = scmp.ne.s32.totalorder %s54, %s55
      %p67 = scmp.eq.s32.totalorder %s24, 1
      %p68 = por %p66, %p67
      %p70 = scmp.ne.s32.totalorder %s55, %s69
      %p71 = scmp.eq.s32.totalorder %s24, 0
      %p72 = por %p70, %p71
      %s74 = sadd.s32 %s73, 1
      %p77 = scmp.eq.s32.totalorder %s18, 1
      %p78 = scmp.ne.s32.totalorder %s73, %s75
      %p79 = scmp.eq.s32.totalorder %s18, 0
      %p80 = por %p78, %p79
      %p81 = scmp.ne.s32.totalorder %s73, %s75
      %p82 = scmp.eq.s32.totalorder %s23, 1
      %p83 = por %p81, %p82
      %p84 = scmp.ne.s32.totalorder %s75, %s76
      %p85 = scmp.eq.s32.totalorder %s23, 0
      %p86 = por %p84, %p85
      %p87 = scmp.ne.s32.totalorder %s75, %s76
      %p88 = scmp.eq.s32.totalorder %s24, 1
      %p89 = por %p87, %p88
      %p91 = scmp.ne.s32.totalorder %s76, %s90
      %p92 = scmp.eq.s32.totalorder %s24, 0
      %p93 = por %p91, %p92
      %s95 = sadd.s32 %s94, 1
      %p98 = scmp.eq.s32.totalorder %s18, 1
      %p99 = scmp.ne.s32.totalorder %s94, %s96
      %p100 = scmp.eq.s32.totalorder %s18, 0
      %p101 = por %p99, %p100
      %p102 = scmp.ne.s32.totalorder %s94, %s96
      %p103 = scmp.eq.s32.totalorder %s23, 1
      %p104 = por %p102, %p103
      %p105 = scmp.ne.s32.totalorder %s96, %s97
      %p106 = scmp.eq.s32.totalorder %s23, 0
      %p107 = por %p105, %p106
      %p108 = scmp.ne.s32.totalorder %s96, %s97
      %p109 = scmp.eq.s32.totalorder %s24, 1
      %p110 = por %p108, %p109
      %p112 = scmp.ne.s32.totalorder %s97, %s111
      %p113 = scmp.eq.s32.totalorder %s24, 0
      %p114 = por %p112, %p113
      %s116 = sadd.s32 %s115, 1
      %p119 = scmp.eq.s32.totalorder %s18, 1
      %p120 = scmp.ne.s32.totalorder %s115, %s117
      %p121 = scmp.eq.s32.totalorder %s18, 0
      %p122 = por %p120, %p121
      %p123 = scmp.ne.s32.totalorder %s115, %s117
      %p124 = scmp.eq.s32.totalorder %s23, 1
      %p125 = por %p123, %p124
      %p126 = scmp.ne.s32.totalorder %s117, %s118
      %p127 = scmp.eq.s32.totalorder %s23, 0
      %p128 = por %p126, %p127
      %p129 = scmp.ne.s32.totalorder %s117, %s118
      %p130 = scmp.eq.s32.totalorder %s24, 1
      %p131 = por %p129, %p130
      %p133 = scmp.ne.s32.totalorder %s118, %s132
      %p134 = scmp.eq.s32.totalorder %s24, 0
      %p135 = por %p133, %p134
      %s137 = sadd.s32 %s136, 1
      %p140 = scmp.eq.s32.totalorder %s18, 1
      %p141 = scmp.ne.s32.totalorder %s136, %s138
      %p142 = scmp.eq.s32.totalorder %s18, 0
      %p143 = por %p141, %p142
      %p144 = scmp.ne.s32.totalorder %s136, %s138
      %p145 = scmp.eq.s32.totalorder %s23, 1
      %p146 = por %p144, %p145
      %p147 = scmp.ne.s32.totalorder %s138, %s139
      %p148 = scmp.eq.s32.totalorder %s23, 0
      %p149 = por %p147, %p148
      %p150 = scmp.ne.s32.totalorder %s138, %s139
      %p151 = scmp.eq.s32.totalorder %s24, 1
      %p152 = por %p150, %p151
      %p154 = scmp.ne.s32.totalorder %s139, %s153
      %p155 = scmp.eq.s32.totalorder %s24, 0
      %p156 = por %p154, %p155
      %s158 = sadd.s32 %s157, 1
      %p161 = scmp.eq.s32.totalorder %s18, 1
      %p162 = scmp.ne.s32.totalorder %s157, %s159
      %p163 = scmp.eq.s32.totalorder %s18, 0
      %p164 = por %p162, %p163
      %p165 = scmp.ne.s32.totalorder %s157, %s159
      %p166 = scmp.eq.s32.totalorder %s23, 1
      %p167 = por %p165, %p166
      %p168 = scmp.ne.s32.totalorder %s159, %s160
      %p169 = scmp.eq.s32.totalorder %s23, 0
      %p170 = por %p168, %p169
      %p171 = scmp.ne.s32.totalorder %s159, %s160
      %p172 = scmp.eq.s32.totalorder %s24, 1
      %p173 = por %p171, %p172
      %p175 = scmp.ne.s32.totalorder %s160, %s174
      %p176 = scmp.eq.s32.totalorder %s24, 0
      %p177 = por %p175, %p176
      %s178 = ssub.s32 %s18, %s25
      %p179 = scmp.eq.s32.totalorder %s178, 0
      %s181 = sadd.s32 %s180, 1
      %s182 = scalar_select %p179, %s180, %s181
      %p185 = pneg %p179
      %p186 = scmp.eq.s32.totalorder %s18, 1
      %p187 = por %p185, %p186
      %p188 = scmp.ne.s32.totalorder %s180, %s183
      %p189 = scmp.eq.s32.totalorder %s18, 0
      %p190 = por %p188, %p189
      %p191 = scmp.ne.s32.totalorder %s180, %s183
      %p192 = scmp.eq.s32.totalorder %s23, 1
      %p193 = por %p191, %p192
      %p194 = scmp.ne.s32.totalorder %s183, %s184
      %p195 = scmp.eq.s32.totalorder %s23, 0
      %p196 = por %p194, %p195
      %p197 = scmp.ne.s32.totalorder %s183, %s184
      %p198 = scmp.eq.s32.totalorder %s24, 1
      %p199 = por %p197, %p198
      %p201 = scmp.ne.s32.totalorder %s184, %s200
      %p202 = scmp.eq.s32.totalorder %s24, 0
      %p203 = por %p201, %p202
      %p204 = scmp.le.s32.totalorder 1, %s18
      %p205 = scmp.lt.s32.totalorder %s18, 3
      %p206 = pnand %p204, %p205
      %p207 = pneg %p206
      // Predicated region
      $region9: #{tpu_custom_call.1} parent=5 // pred_check
        _
      $region10: #{tpu_custom_call.1} parent=5 // pred_check_branch
        %209 = sbr.rel (%p206) target = $region12
      $region11: #{tpu_custom_call.1} parent=5 // pred_region
        %s210 = ssub.s32 %s18, 1
        // Predicated region
        $region13: #{tpu_custom_call.1} parent=11 // pred_check
          %p211 = pneg %p65
        $region14: #{tpu_custom_call.1} parent=11 // pred_check_branch
          %213 = sbr.rel (%p211) target = $region16
        $region15: #{tpu_custom_call.1} parent=11 // pred_region
          %s215 = ssub.s32 256, 256
          %216 = vsyncadd [#allocation6], %s215
          %s217 = sshll.u32 [#allocation5], 4
          %s218 = int_to_ptr.vmem [resolvable:$true] %s217
          %223 = dma.hbm_to_vmem [thread:$0]  %s1, 256, %s218, [#allocation6], 64, 64, 4
        $region16: #{tpu_custom_call.1} parent=11 // pred_fallthru
          _
        // Predicated region
        $region17: #{tpu_custom_call.1} parent=11 // pred_check
          %p224 = pneg %p86
        $region18: #{tpu_custom_call.1} parent=11 // pred_check_branch
          %226 = sbr.rel (%p224) target = $region20
        $region19: #{tpu_custom_call.1} parent=11 // pred_region
          _
        $region20: #{tpu_custom_call.1} parent=11 // pred_fallthru
          _
        // Predicated region
        $region21: #{tpu_custom_call.1} parent=11 // pred_check
          %p227 = pneg %p107
        $region22: #{tpu_custom_call.1} parent=11 // pred_check_branch
          %229 = sbr.rel (%p227) target = $region24
        $region23: #{tpu_custom_call.1} parent=11 // pred_region
          %s231 = ssub.s32 320, 320
          %232 = vsyncadd [#allocation6], %s231
          %s233 = sshll.u32 [#allocation7], 4
          %s234 = int_to_ptr.vmem [resolvable:$true] %s233
          %239 = dma.hbm_to_vmem [thread:$0]  %s3, 320, %s234, [#allocation6], 64, 64, 4
        $region24: #{tpu_custom_call.1} parent=11 // pred_fallthru
          _
        // Predicated region
        $region25: #{tpu_custom_call.1} parent=11 // pred_check
          %p240 = pneg %p128
        $region26: #{tpu_custom_call.1} parent=11 // pred_check_branch
          %242 = sbr.rel (%p240) target = $region28
        $region27: #{tpu_custom_call.1} parent=11 // pred_region
          _
        $region28: #{tpu_custom_call.1} parent=11 // pred_fallthru
          _
        // Predicated region
        $region29: #{tpu_custom_call.1} parent=11 // pred_check
          %p243 = pneg %p149
        $region30: #{tpu_custom_call.1} parent=11 // pred_check_branch
          %245 = sbr.rel (%p243) target = $region32
        $region31: #{tpu_custom_call.1} parent=11 // pred_region
          _
        $region32: #{tpu_custom_call.1} parent=11 // pred_fallthru
          _
        // Predicated region
        $region33: #{tpu_custom_call.1} parent=11 // pred_check
          %p246 = pneg %p170
        $region34: #{tpu_custom_call.1} parent=11 // pred_check_branch
          %248 = sbr.rel (%p246) target = $region36
        $region35: #{tpu_custom_call.1} parent=11 // pred_region
          _
        $region36: #{tpu_custom_call.1} parent=11 // pred_fallthru
          _
      $region12: #{tpu_custom_call.1} parent=5 // pred_fallthru
        _
      %p249 = scmp.lt.s32.totalorder %s18, 2
      // Predicated region
      $region37: #{tpu_custom_call.1} parent=5 // pred_check
        %p250 = pneg %p249
      $region38: #{tpu_custom_call.1} parent=5 // pred_check_branch
        %252 = sbr.rel (%p250) target = $region40
      $region39: #{tpu_custom_call.1} parent=5 // pred_region
        // Predicated region
        $region41: #{tpu_custom_call.1} parent=39 // pred_check
          %p253 = pneg %p38
        $region42: #{tpu_custom_call.1} parent=39 // pred_check_branch
          %255 = sbr.rel (%p253) target = $region44
        $region43: #{tpu_custom_call.1} parent=39 // pred_region
          %s256 = sand.u32 %s28, 1
          %s257 = scalar_lea.sflag [#allocation4], %s256
          %s258 = sand.u32 %s28, 1
          %s259 = smul.addr %s258, 8
          %s260 = scalar_lea.vmem [#allocation3], %s259
          %s262 = ssub.s32 128, 128
          %263 = vsyncadd %s257, %s262
          %s264 = smul.addr %s18, 128
          %s265 = scalar_lea.hbm %s0, %s264
          %s267 = sshll.u32 %s260, 4
          %s268 = int_to_ptr.vmem [resolvable:$true] %s267
          %270 = dma.hbm_to_vmem [thread:$0]  %s265, 128, %s268, %s257
        $region44: #{tpu_custom_call.1} parent=39 // pred_fallthru
          _
      $region40: #{tpu_custom_call.1} parent=5 // pred_fallthru
        _
      %p271 = scmp.le.s32.totalorder 1, %s18
      %p272 = scmp.lt.s32.totalorder %s18, 3
      %p273 = pnand %p271, %p272
      %p274 = pneg %p273
      // Predicated region
      $region45: #{tpu_custom_call.1} parent=5 // pred_check
        _
      $region46: #{tpu_custom_call.1} parent=5 // pred_check_branch
        %276 = sbr.rel (%p273) target = $region48
      $region47: #{tpu_custom_call.1} parent=5 // pred_region
        %s277 = ssub.s32 %s18, 1
        %s278 = sand.u32 %s31, 1
        %s279 = scalar_lea.sflag [#allocation4], %s278
        %s280 = sand.u32 %s31, 1
        %s281 = smul.addr %s280, 8
        %s282 = scalar_lea.vmem [#allocation3], %s281
        // Predicated region
        $region49: #{tpu_custom_call.1} parent=47 // pred_check
          %p283 = pneg %p44
        $region50: #{tpu_custom_call.1} parent=47 // pred_check_branch
          %285 = sbr.rel (%p283) target = $region52
        $region51: #{tpu_custom_call.1} parent=47 // pred_region
          %286 = dma.done %s279, 128
        $region52: #{tpu_custom_call.1} parent=47 // pred_fallthru
          _
        // Predicated region
        $region53: #{tpu_custom_call.1} parent=47 // pred_check
          %p287 = pneg %p65
        $region54: #{tpu_custom_call.1} parent=47 // pred_check_branch
          %289 = sbr.rel (%p287) target = $region56
        $region55: #{tpu_custom_call.1} parent=47 // pred_region
          %290 = dma.done [#allocation6], 256
        $region56: #{tpu_custom_call.1} parent=47 // pred_fallthru
          _
        // Predicated region
        $region57: #{tpu_custom_call.1} parent=47 // pred_check
          %p291 = pneg %p107
        $region58: #{tpu_custom_call.1} parent=47 // pred_check_branch
          %293 = sbr.rel (%p291) target = $region60
        $region59: #{tpu_custom_call.1} parent=47 // pred_region
          %294 = dma.done [#allocation6], 320
        $region60: #{tpu_custom_call.1} parent=47 // pred_fallthru
          _
        %s295 = sand.u32 %s31, 1
        %s296 = scalar_lea.sflag [#allocation4], %s295
        %s297 = sand.u32 %s31, 1
        %s298 = smul.addr %s297, 8
        %s299 = scalar_lea.vmem [#allocation3], %s298
        %p300 = pneg %p44
        %p301 = pneg %p41
        %p302 = pneg %p65
        %p303 = pneg %p62
        %p304 = pneg %p86
        %p305 = pneg %p83
        %p306 = pneg %p107
        %p307 = pneg %p104
        %p308 = pneg %p128
        %p309 = pneg %p125
        %p310 = pneg %p149
        %p311 = pneg %p146
        %p312 = pneg %p170
        %p313 = pneg %p167
        %p314 = pneg %p196
        %p315 = pneg %p193
        %p316 = scmp.lt.s32.totalorder %s23, 1
        %s317 = scalar_select %p316, %s23, 1
        %s318 = smul.addr %s317, 8
        %s319 = scalar_lea.vmem %s7, %s318
        %p320 = scmp.lt.s32.totalorder %s23, 1
        %s321 = scalar_select %p320, %s23, 1
        %s322 = smul.addr %s321, 8
        %s323 = scalar_lea.vmem %s7, %s322
        %v325 = vld [vmem:[%s282] sm:$0xff]
        %v326 = vpack.c.bf16 %v325, %v325
        %v327 = vld [vmem:[#allocation5] sm:$0xf]
        %v328 = vld [vmem:[#allocation5 + $0x4] sm:$0xf]
        %v329 = vld [vmem:[#allocation5 + $0x8] sm:$0xf]
        %v330 = vld [vmem:[#allocation5 + $0xc] sm:$0xf]
        %v331 = vld [vmem:[%s2] sm:$0x1]
        %v333 = vlaneseq
        %v334 = vshrl.u32 %v333, 7
        %v335 = vsub.s32 0, %v334
        %v336 = vrot.slane %v331, %v335
        %v342 = vunpack.c.l.b16 %v327
        %v343 = vunpack.c.l.b16 %v328
        %v344 = vunpack.c.l.b16 %v329
        %v345 = vunpack.c.l.b16 %v330
        %v346 = vpack.c.b16 %v343, %v342
        %v347 = vpack.c.b16 %v345, %v344
        %vm350 = vcmask 261120
        %v352 = vsel %vm350, %v326, 0
        %354 = vmatprep.subr.bf16.mxu0 0
        %355 = vmatpush1.bf16.msra.mxu0 %v346
        %356 = vmatprep.subr.bf16.mxu0 0
        %357 = vmatpush1.bf16.msra.mxu0 %v347
        %358 = vmatprep.subr.bf16.mxu0 0
        %359 = vmatpush1.bf16.msra.mxu0 0
        %360 = vmatprep.subr.bf16.mxu0 0
        %361 = vmatpush1.bf16.msra.mxu0 0
        %362 = vmatprep.subr.bf16.mxu0 0
        %363 = vmatpush1.bf16.msra.mxu0 0
        %364 = vmatprep.subr.bf16.mxu0 0
        %365 = vmatpush1.bf16.msra.mxu0 0
        %366 = vmatprep.subr.bf16.mxu0 0
        %367 = vmatpush1.bf16.msra.mxu0 0
        %368 = vmatprep.subr.bf16.mxu0 0
        %369 = vmatpush1.bf16.msra.mxu0 0
        %370 = vmatprep.subr.bf16.mxu0 0
        %371 = vmatpush1.bf16.msra.mxu0 0
        %372 = vmatprep.subr.bf16.mxu0 0
        %373 = vmatpush1.bf16.msra.mxu0 0
        %374 = vmatprep.subr.bf16.mxu0 0
        %375 = vmatpush1.bf16.msra.mxu0 0
        %376 = vmatprep.subr.bf16.mxu0 0
        %377 = vmatpush1.bf16.msra.mxu0 0
        %378 = vmatprep.subr.bf16.mxu0 0
        %379 = vmatpush1.bf16.msra.mxu0 0
        %380 = vmatprep.subr.bf16.mxu0 0
        %381 = vmatpush1.bf16.msra.mxu0 0
        %382 = vmatprep.subr.bf16.mxu0 0
        %383 = vmatpush1.bf16.msra.mxu0 0
        %384 = vmatprep.subr.bf16.mxu0 0
        %385 = vmatpush1.bf16.msra.mxu0 0
        %386 = vmatprep.mubr.bf16.mxu0 0
        %387 = vmatmul.mubr.bf16.gmra.mrb[0].mxu0 %v352
        %v388 = vpop.f32.mrb[0].mxu0
        %v389 = vadd.f32 %v336, %v388
        %v390 = vpop.f32.mrb[0].mxu0
        %v391 = vpop.f32.mrb[0].mxu0
        %v392 = vpop.f32.mrb[0].mxu0
        %393 = vdwg.mxu0
        %v394 = vmax.f32 %v389, 0.0
        %v395 = vpack.c.bf16 %v394, %v394
        %v396 = vld [vmem:[#allocation7] sm:$0xf]
        %v397 = vld [vmem:[#allocation7 + $0x4] sm:$0xf]
        %v398 = vld [vmem:[#allocation7 + $0x8] sm:$0xf]
        %v399 = vld [vmem:[#allocation7 + $0xc] sm:$0xf]
        %v400 = vld [vmem:[#allocation7 + $0x10] sm:$0xf]
        %v401 = vld [vmem:[%s4] sm:$0x1]
        %v403 = vlaneseq
        %v404 = vshrl.u32 %v403, 7
        %v405 = vsub.s32 0, %v404
        %v406 = vrot.slane %v401, %v405
        %v413 = vunpack.c.l.b16 %v396
        %v414 = vunpack.c.l.b16 %v397
        %v415 = vunpack.c.l.b16 %v398
        %v416 = vunpack.c.l.b16 %v399
        %v417 = vunpack.c.l.b16 %v400
        %v418 = vpack.c.b16 %v414, %v413
        %v419 = vpack.c.b16 %v416, %v415
        %v420 = vpack.c.b16 %v417, %v417
        %vm423 = vcmask 326656
        %v425 = vsel %vm423, %v395, 0
        %vm427 = vcmask 1043456
        %v429 = vsel %vm427, %v420, 0
        %431 = vmatprep.subr.bf16.mxu0 0
        %432 = vmatpush1.bf16.msra.mxu0 %v418
        %433 = vmatprep.subr.bf16.mxu0 0
        %434 = vmatpush1.bf16.msra.mxu0 %v419
        %435 = vmatprep.subr.bf16.mxu0 0
        %436 = vmatpush1.bf16.msra.mxu0 %v429
        %437 = vmatprep.subr.bf16.mxu0 0
        %438 = vmatpush1.bf16.msra.mxu0 0
        %439 = vmatprep.subr.bf16.mxu0 0
        %440 = vmatpush1.bf16.msra.mxu0 0
        %441 = vmatprep.subr.bf16.mxu0 0
        %442 = vmatpush1.bf16.msra.mxu0 0
        %443 = vmatprep.subr.bf16.mxu0 0
        %444 = vmatpush1.bf16.msra.mxu0 0
        %445 = vmatprep.subr.bf16.mxu0 0
        %446 = vmatpush1.bf16.msra.mxu0 0
        %447 = vmatprep.subr.bf16.mxu0 0
        %448 = vmatpush1.bf16.msra.mxu0 0
        %449 = vmatprep.subr.bf16.mxu0 0
        %450 = vmatpush1.bf16.msra.mxu0 0
        %451 = vmatprep.subr.bf16.mxu0 0
        %452 = vmatpush1.bf16.msra.mxu0 0
        %453 = vmatprep.subr.bf16.mxu0 0
        %454 = vmatpush1.bf16.msra.mxu0 0
        %455 = vmatprep.subr.bf16.mxu0 0
        %456 = vmatpush1.bf16.msra.mxu0 0
        %457 = vmatprep.subr.bf16.mxu0 0
        %458 = vmatpush1.bf16.msra.mxu0 0
        %459 = vmatprep.subr.bf16.mxu0 0
        %460 = vmatpush1.bf16.msra.mxu0 0
        %461 = vmatprep.subr.bf16.mxu0 0
        %462 = vmatpush1.bf16.msra.mxu0 0
        %463 = vmatprep.mubr.bf16.mxu0 0
        %464 = vmatmul.mubr.bf16.gmra.mrb[0].mxu0 %v425
        %v465 = vpop.f32.mrb[0].mxu0
        %v466 = vadd.f32 %v406, %v465
        %v467 = vpop.f32.mrb[0].mxu0
        %v468 = vpop.f32.mrb[0].mxu0
        %v469 = vpop.f32.mrb[0].mxu0
        %470 = vdwg.mxu0
        %v471 = vmax.f32 %v466, 0.0
        %v472 = vld [vmem:[%s5] sm:$0x1]
        %v474 = vlaneseq
        %v475 = vshrl.u32 %v474, 7
        %v476 = vsub.s32 0, %v475
        %v477 = vrot.slane %v472, %v476
        %v479 = vmul.f32 %v471, %v477
        %v480 = vsel %vm423, %v479, 0.0
        %481 = vadd.xlane.f32.xlu0 %v480
        %v482 = vpop.xlane.xlu0 %481
        %s483 = sld [smem:[#allocation2]]
        %v484 = vstv %s483
        %v485 = vadd.f32 %v482, %v484
        %vm486 = vcmask 7168
        %487 = vst.msk [vmem:[%s323] sm:$0xff] %vm486, %v485
        %p488 = scmp.lt.s32.totalorder %s23, 1
        %s489 = scalar_select %p488, %s23, 1
        %s490 = smul.addr %s489, 8
        %s491 = scalar_lea.vmem %s7, %s490
        // Predicated region
        $region61: #{tpu_custom_call.1} parent=47 // pred_check
          %p492 = pneg %p193
        $region62: #{tpu_custom_call.1} parent=47 // pred_check_branch
          %494 = sbr.rel (%p492) target = $region64
        $region63: #{tpu_custom_call.1} parent=47 // pred_region
          _
        $region64: #{tpu_custom_call.1} parent=47 // pred_fallthru
          _
      $region48: #{tpu_custom_call.1} parent=5 // pred_fallthru
        _
      %p495 = scmp.le.s32.totalorder 2, %s18
      // Predicated region
      $region65: #{tpu_custom_call.1} parent=5 // pred_check
        %p496 = pneg %p495
      $region66: #{tpu_custom_call.1} parent=5 // pred_check_branch
        %498 = sbr.rel (%p496) target = $region68
      $region67: #{tpu_custom_call.1} parent=5 // pred_region
        %s499 = ssub.s32 %s18, 2
        // Predicated region
        $region69: #{tpu_custom_call.1} parent=67 // pred_check
          %p500 = pneg %p199
        $region70: #{tpu_custom_call.1} parent=67 // pred_check_branch
          %502 = sbr.rel (%p500) target = $region72
        $region71: #{tpu_custom_call.1} parent=67 // pred_region
          %p503 = scmp.lt.s32.totalorder %s24, 1
          %s504 = scalar_select %p503, %s24, 1
          %s505 = smul.addr %s504, 8
          %s506 = scalar_lea.vmem %s7, %s505
        $region72: #{tpu_custom_call.1} parent=67 // pred_fallthru
          _
      $region68: #{tpu_custom_call.1} parent=5 // pred_fallthru
        _
    $region6: #{tpu_custom_call.1} parent=1 // loop_footer
      %s22 = sadd.s32 1, %s18
    $region7: #{tpu_custom_call.1} parent=1 // loop_footer_branch
      %17 = sbr.rel target = $region3
    $region8: #{tpu_custom_call.1} parent=1 // loop_exit
      _
    %507 = vsyncpa [#allocation4], 1
    %s508 = scalar_lea.sflag [#allocation4], 1
    %509 = vsyncpa %s508, 1
    %510 = vsyncpa [#allocation6], 1

</llo_original>
